<compile_context>
chip_gen: v7x
topology: tpu7x:2x2x1
jax: 0.10.0
libtpu: 0.0.40
codegen_flags: <defaults>
</compile_context>

<pallas_src>
import functools

import jax
import jax.numpy as jnp
from jax.experimental import pallas as pl
from jax.experimental.pallas import tpu as pltpu


def _round_up(x, m):
    return ((x + m - 1) // m) * m


def _padded_bytes(shape, dtype):
    """VMEM footprint of an array after Mosaic (sublane, 128-lane) tiling."""
    itemsize = jnp.dtype(dtype).itemsize
    sublane = 8 * max(1, 4 // itemsize)        # 8 for f32, 16 for bf16, 32 for int8
    dims = list(shape)
    if len(dims) == 1:
        dims = [1] + dims
    dims[-1] = _round_up(dims[-1], 128)
    dims[-2] = _round_up(dims[-2], sublane)
    n = 1
    for d in dims:
        n *= d
    return n * itemsize


def _device_defaults():
    """Per-generation knobs: (prefer >=2 grid steps, VMEM budget, VMEM limit)."""
    kind = ""
    try:
        kind = jax.devices()[0].device_kind.lower()
    except Exception:
        pass
    if ("v5 lite" in kind) or ("v5e" in kind) or ("v6" in kind):
        # Single TensorCore, 128 MiB VMEM: no reason to keep multiple grid
        # steps -- take the biggest batch block and a large scoped-VMEM limit.
        return False, 80 << 20, 100 << 20
    # v7x-style parts (2 TensorCores, 64 MiB VMEM) and unknown chips: keep >=2
    # grid steps so the parallel axis splits across cores, stay under the
    # 32 MiB scoped-VMEM default.
    return True, 20 << 20, 32 << 20


def _choose_batch_block(N, fits, prefer_multi_step, cap=8):
    """Largest batch block (<= cap, divides N) whose padded footprint fits the
    budget; on 2-TensorCore parts prefer blocks that leave >= 2 grid steps."""
    divisors = [d for d in range(1, min(N, cap) + 1) if N % d == 0]
    fitting = [d for d in divisors if fits(d)]
    if not fitting:
        return 1
    if prefer_multi_step:
        multi = [d for d in fitting if N // d >= 2]
        if multi:
            return max(multi)
    return max(fitting)


def _conv_merger_kernel(x_ref, w_ref, o_ref, imcol_ref, *,
                        NB, Cin, W2, P_flat, K, K_pad):
    # x_ref     : (NB, Cin, P_flat)   zero-padded activations, flat spatial in lanes
    # w_ref     : (Cout, K_pad)       weight (tap-major, ci-minor); bias in column K
    # o_ref     : (NB, Cout, P_flat)  output, flat padded spatial in lanes
    # imcol_ref : (K_pad, P_flat)     scratch: transposed im2col (taps/channels x spatial)
    #
    # Rows K..K_pad-1 of imcol never hold tap data: row K is the all-ones bias
    # row, the rest are zeros (matching zero weight columns).  They are
    # re-written every step (a single tiny (K_pad-K, P_flat) store) rather than
    # gated on program_id==0: with a "parallel" grid axis each TensorCore owns
    # its own scratch and only one of them would ever see step 0.
    rows = jax.lax.broadcasted_iota(jnp.int32, (K_pad - K, P_flat), 0)
    imcol_ref[K:K_pad, :] = jnp.where(rows == 0, 1.0, 0.0).astype(imcol_ref.dtype)

    for b in range(NB):
        x2d = x_ref[b]                                        # (Cin, P_flat)
        # Transposed im2col: tap (ky, kx) is a static lane roll of the padded
        # slab by the flat offset (ky-1)*(W+2)+(kx-1).  Full-lane-width stores;
        # wrapped lanes only ever land on spatial-halo output positions, which
        # the wrapper discards.
        for ky in range(3):
            for kx in range(3):
                t = ky * 3 + kx
                d = (ky - 1) * W2 + (kx - 1)
                shifted = x2d if d == 0 else pltpu.roll(
                    x2d, shift=(-d) % P_flat, axis=1)
                imcol_ref[t * Cin:(t + 1) * Cin, :] = shifted
        # One MXU matmul per batch element; bias rides along via the ones row.
        acc = jnp.dot(w_ref[...], imcol_ref[...],
                      preferred_element_type=jnp.float32)     # (Cout, P_flat)
        o_ref[b] = acc.astype(o_ref.dtype)


def conv_merger_forward(image_nchw, landmarks_nchw, weight_oihw, bias, *,
                        compute_dtype=None):
    """ConvMerger forward: cat([image, landmarks], dim=1) -> Conv2d(3x3, pad=1).

    NCHW in, NCHW out, matching the PyTorch module.  compute_dtype may be set
    to jnp.bfloat16 on v6e/v7x to halve packing/matmul traffic (accumulation
    stays f32); the 1e-4 self-test tolerance only holds for the f32 path.
    """
    N, Ci, H, W = image_nchw.shape
    Cl = landmarks_nchw.shape[1]
    Cin = Ci + Cl
    Cout = weight_oihw.shape[0]
    out_dtype = image_nchw.dtype
    cdt = jnp.dtype(compute_dtype) if compute_dtype is not None else jnp.dtype(out_dtype)

    H2, W2 = H + 2, W + 2
    P = H2 * W2
    P_flat = _round_up(P, 128)          # lane-dense flat padded spatial
    K = 9 * Cin
    K_pad = _round_up(K + 1, 8)         # +1 bias row, padded to a sublane multiple

    # Concat + spatial zero-pad + flatten in one small XLA pass (doing this in
    # HBM keeps the kernel free of masked partial-lane writes).  No transposes:
    # the layout stays NCHW-native with the flat padded spatial in lanes.
    merged = jnp.concatenate([image_nchw, landmarks_nchw], axis=1).astype(cdt)
    xflat = jnp.pad(merged, ((0, 0), (0, 0), (1, 1), (1, 1))).reshape(N, Cin, P)
    xflat = jnp.pad(xflat, ((0, 0), (0, 0), (0, P_flat - P)))

    # PyTorch OIHW weight -> (Cout, 9*Cin) tap-major / ci-minor; bias folded
    # into column K; zero-padded to K_pad.
    w2 = jnp.transpose(weight_oihw, (0, 2, 3, 1)).reshape(Cout, K)
    w2 = jnp.concatenate([w2, bias.reshape(Cout, 1)], axis=1)
    w2 = jnp.pad(w2, ((0, 0), (0, K_pad - (K + 1)))).astype(cdt)

    # Batch block: largest divisor of N whose Mosaic-padded footprint
    # (double-buffered blocks + im2col scratch) fits the per-generation budget.
    prefer_multi_step, budget, vmem_limit = _device_defaults()

    def step_bytes(nb):
        return (2 * _padded_bytes((nb, Cin, P_flat), cdt)           # input blocks (x2 buf)
                + 2 * _padded_bytes((Cout, K_pad), cdt)             # weight (x2 buf)
                + 2 * _padded_bytes((nb, Cout, P_flat), out_dtype)  # output blocks (x2 buf)
                + _padded_bytes((K_pad, P_flat), cdt))              # im2col scratch

    NB = _choose_batch_block(N, lambda nb: step_bytes(nb) <= budget,
                             prefer_multi_step)
    vmem_limit = int(min(max(vmem_limit, step_bytes(NB) + (4 << 20)), 112 << 20))
    # TODO(synk): for very large H*W the (K_pad, P_flat) im2col scratch itself can
    # outgrow VMEM; a spatial (lane) tiling of P_flat would be needed there.

    grid = (N // NB,)
    kernel = functools.partial(
        _conv_merger_kernel,
        NB=NB, Cin=Cin, W2=W2, P_flat=P_flat, K=K, K_pad=K_pad)

    out_flat = pl.pallas_call(
        kernel,
        out_shape=jax.ShapeDtypeStruct((N, Cout, P_flat), out_dtype),
        grid_spec=pltpu.PrefetchScalarGridSpec(
            num_scalar_prefetch=0,
            grid=grid,
            in_specs=[
                pl.BlockSpec((NB, Cin, P_flat), lambda g: (g, 0, 0)),
                pl.BlockSpec((Cout, K_pad), lambda g: (0, 0)),
            ],
            out_specs=pl.BlockSpec((NB, Cout, P_flat), lambda g: (g, 0, 0)),
            scratch_shapes=[pltpu.VMEM((K_pad, P_flat), cdt)],
        ),
        compiler_params=pltpu.CompilerParams(
            dimension_semantics=("parallel",),
            vmem_limit_bytes=vmem_limit,
        ),
    )(xflat, w2)

    # Output is already NCHW: drop the flat-lane tail and the spatial halo.
    out = out_flat[:, :, :P].reshape(N, Cout, H2, W2)[:, :, 1:H + 1, 1:W + 1]
    return out.astype(out_dtype)


def init_conv_merger_params(key, image_channels, landmarks_channels,
                            tensor_channels):
    """Deterministic init mimicking nn.Conv2d default (uniform +-1/sqrt(fan_in))."""
    # TODO(synk): spectral_norm is a training-time weight reparametrization; pass
    # the already-normalized weight to conv_merger_forward if it is enabled.
    cin = image_channels + landmarks_channels
    fan_in = cin * 3 * 3
    bound = 1.0 / jnp.sqrt(float(fan_in))
    kw, kb = jax.random.split(key)
    weight = jax.random.uniform(
        kw, (tensor_channels, cin, 3, 3), jnp.float32, -bound, bound)  # OIHW
    bias = jax.random.uniform(kb, (tensor_channels,), jnp.float32, -bound, bound)
    return weight, bias


if __name__ == "__main__":
    key = jax.random.PRNGKey(0)
    k_img, k_lmk, k_par = jax.random.split(key, 3)

    N, C_img, C_lmk, C_out, H, W = 2, 4, 4, 8, 16, 16
    image = jax.random.normal(k_img, (N, C_img, H, W), jnp.float32)
    landmarks = jax.random.normal(k_lmk, (N, C_lmk, H, W), jnp.float32)
    weight, bias = init_conv_merger_params(k_par, C_img, C_lmk, C_out)

    out = conv_merger_forward(image, landmarks, weight, bias)
    out = jax.block_until_ready(out)

    # Correctness check against the XLA conv reference (same semantics as PyTorch).
    merged = jnp.concatenate([image, landmarks], axis=1)
    ref = jax.lax.conv_general_dilated(
        merged, weight, window_strides=(1, 1), padding="SAME",
        dimension_numbers=("NCHW", "OIHW", "NCHW"),
    ) + bias[None, :, None, None]
    assert out.shape == (N, C_out, H, W)
    assert jnp.allclose(out, ref, atol=1e-4, rtol=1e-4)

    print("KERNEL_OK")
</pallas_src>

<mosaic_0001>
module attributes {stable_mosaic.version = 11 : i64} {
  func.func @_conv_merger_kernel(%arg0: i32, %arg1: memref<1x8x384xf32, #tpu.memory_space<vmem>>, %arg2: memref<8x80xf32, #tpu.memory_space<vmem>>, %arg3: memref<1x8x384xf32, #tpu.memory_space<vmem>>, %arg4: memref<80x384xf32, #tpu.memory_space<vmem>>) attributes {dimension_semantics = [#tpu.dimension_semantics<parallel>], iteration_bounds = array<i64: 2>, scalar_prefetch = 0 : i64, scratch_operands = 1 : i64, tpu.core_type = #tpu.core_type<tc>, window_params = [{transform_indices = @transform_0, window_bounds = array<i64: 1, 8, 384>}, {pipeline_mode = #tpu.pipeline_mode<synchronous>, transform_indices = @transform_1, window_bounds = array<i64: 8, 80>}, {transform_indices = @transform_2, window_bounds = array<i64: 1, 8, 384>}]} {
    %0 = tpu.iota {dimensions = array<i32: 0>} : vector<8x384xi32>
    %c0_i32 = arith.constant 0 : i32
    %1 = vector.broadcast %c0_i32 : i32 to vector<8x384xi32>
    %2 = arith.cmpi eq, %0, %1 : vector<8x384xi32>
    %cst = arith.constant 1.000000e+00 : f32
    %cst_0 = arith.constant 0.000000e+00 : f32
    %3 = vector.broadcast %cst : f32 to vector<8x384xf32>
    %4 = vector.broadcast %cst_0 : f32 to vector<8x384xf32>
    %5 = arith.select %2, %3, %4 : vector<8x384xi1>, vector<8x384xf32>
    %c72 = arith.constant 72 : index
    %c0 = arith.constant 0 : index
    %6 = vector.load %arg4[%c72, %c0] : memref<80x384xf32, #tpu.memory_space<vmem>>, vector<8x384xf32>
    tpu.vector_store %arg4[%c72, %c0], %5 {strides = array<i32>} : memref<80x384xf32, #tpu.memory_space<vmem>>, vector<8x384xf32>,
    %c0_1 = arith.constant 0 : index
    %c0_2 = arith.constant 0 : index
    %c0_3 = arith.constant 0 : index
    %7 = vector.load %arg1[%c0_1, %c0_2, %c0_3] : memref<1x8x384xf32, #tpu.memory_space<vmem>>, vector<1x8x384xf32>
    %8 = vector.shape_cast %7 : vector<1x8x384xf32> to vector<8x384xf32>
    %c19_i32 = arith.constant 19 : i32
    %9 = tpu.dynamic_rotate %8 by %c19_i32 dim 1 : vector<8x384xf32>, i32 -> vector<8x384xf32>
    %c0_4 = arith.constant 0 : index
    %c0_5 = arith.constant 0 : index
    %10 = vector.load %arg4[%c0_4, %c0_5] : memref<80x384xf32, #tpu.memory_space<vmem>>, vector<8x384xf32>
    tpu.vector_store %arg4[%c0_4, %c0_5], %9 {strides = array<i32>} : memref<80x384xf32, #tpu.memory_space<vmem>>, vector<8x384xf32>,
    %c18_i32 = arith.constant 18 : i32
    %11 = tpu.dynamic_rotate %8 by %c18_i32 dim 1 : vector<8x384xf32>, i32 -> vector<8x384xf32>
    %c8 = arith.constant 8 : index
    %c0_6 = arith.constant 0 : index
    %12 = vector.load %arg4[%c8, %c0_6] : memref<80x384xf32, #tpu.memory_space<vmem>>, vector<8x384xf32>
    tpu.vector_store %arg4[%c8, %c0_6], %11 {strides = array<i32>} : memref<80x384xf32, #tpu.memory_space<vmem>>, vector<8x384xf32>,
    %c17_i32 = arith.constant 17 : i32
    %13 = tpu.dynamic_rotate %8 by %c17_i32 dim 1 : vector<8x384xf32>, i32 -> vector<8x384xf32>
    %c16 = arith.constant 16 : index
    %c0_7 = arith.constant 0 : index
    %14 = vector.load %arg4[%c16, %c0_7] : memref<80x384xf32, #tpu.memory_space<vmem>>, vector<8x384xf32>
    tpu.vector_store %arg4[%c16, %c0_7], %13 {strides = array<i32>} : memref<80x384xf32, #tpu.memory_space<vmem>>, vector<8x384xf32>,
    %c1_i32 = arith.constant 1 : i32
    %15 = tpu.dynamic_rotate %8 by %c1_i32 dim 1 : vector<8x384xf32>, i32 -> vector<8x384xf32>
    %c24 = arith.constant 24 : index
    %c0_8 = arith.constant 0 : index
    %16 = vector.load %arg4[%c24, %c0_8] : memref<80x384xf32, #tpu.memory_space<vmem>>, vector<8x384xf32>
    tpu.vector_store %arg4[%c24, %c0_8], %15 {strides = array<i32>} : memref<80x384xf32, #tpu.memory_space<vmem>>, vector<8x384xf32>,
    %c32 = arith.constant 32 : index
    %c0_9 = arith.constant 0 : index
    %17 = vector.load %arg4[%c32, %c0_9] : memref<80x384xf32, #tpu.memory_space<vmem>>, vector<8x384xf32>
    tpu.vector_store %arg4[%c32, %c0_9], %8 {strides = array<i32>} : memref<80x384xf32, #tpu.memory_space<vmem>>, vector<8x384xf32>,
    %c383_i32 = arith.constant 383 : i32
    %18 = tpu.dynamic_rotate %8 by %c383_i32 dim 1 : vector<8x384xf32>, i32 -> vector<8x384xf32>
    %c40 = arith.constant 40 : index
    %c0_10 = arith.constant 0 : index
    %19 = vector.load %arg4[%c40, %c0_10] : memref<80x384xf32, #tpu.memory_space<vmem>>, vector<8x384xf32>
    tpu.vector_store %arg4[%c40, %c0_10], %18 {strides = array<i32>} : memref<80x384xf32, #tpu.memory_space<vmem>>, vector<8x384xf32>,
    %c367_i32 = arith.constant 367 : i32
    %20 = tpu.dynamic_rotate %8 by %c367_i32 dim 1 : vector<8x384xf32>, i32 -> vector<8x384xf32>
    %c48 = arith.constant 48 : index
    %c0_11 = arith.constant 0 : index
    %21 = vector.load %arg4[%c48, %c0_11] : memref<80x384xf32, #tpu.memory_space<vmem>>, vector<8x384xf32>
    tpu.vector_store %arg4[%c48, %c0_11], %20 {strides = array<i32>} : memref<80x384xf32, #tpu.memory_space<vmem>>, vector<8x384xf32>,
    %c366_i32 = arith.constant 366 : i32
    %22 = tpu.dynamic_rotate %8 by %c366_i32 dim 1 : vector<8x384xf32>, i32 -> vector<8x384xf32>
    %c56 = arith.constant 56 : index
    %c0_12 = arith.constant 0 : index
    %23 = vector.load %arg4[%c56, %c0_12] : memref<80x384xf32, #tpu.memory_space<vmem>>, vector<8x384xf32>
    tpu.vector_store %arg4[%c56, %c0_12], %22 {strides = array<i32>} : memref<80x384xf32, #tpu.memory_space<vmem>>, vector<8x384xf32>,
    %c365_i32 = arith.constant 365 : i32
    %24 = tpu.dynamic_rotate %8 by %c365_i32 dim 1 : vector<8x384xf32>, i32 -> vector<8x384xf32>
    %c64 = arith.constant 64 : index
    %c0_13 = arith.constant 0 : index
    %25 = vector.load %arg4[%c64, %c0_13] : memref<80x384xf32, #tpu.memory_space<vmem>>, vector<8x384xf32>
    tpu.vector_store %arg4[%c64, %c0_13], %24 {strides = array<i32>} : memref<80x384xf32, #tpu.memory_space<vmem>>, vector<8x384xf32>,
    %c0_14 = arith.constant 0 : index
    %c0_15 = arith.constant 0 : index
    %26 = vector.load %arg2[%c0_14, %c0_15] : memref<8x80xf32, #tpu.memory_space<vmem>>, vector<8x80xf32>
    %c0_16 = arith.constant 0 : index
    %c0_17 = arith.constant 0 : index
    %27 = vector.load %arg4[%c0_16, %c0_17] : memref<80x384xf32, #tpu.memory_space<vmem>>, vector<80x384xf32>
    %cst_18 = arith.constant dense<0.000000e+00> : vector<8x384xf32>
    %28 = tpu.matmul %26, %27, %cst_18 {dimension_numbers = #tpu.dot_dimension_numbers<[1], [0], [0], [1], [0, 0, 1, 1], [], []>} : vector<8x80xf32>, vector<80x384xf32>, vector<8x384xf32> -> vector<8x384xf32>
    %c0_19 = arith.constant 0 : index
    %c0_20 = arith.constant 0 : index
    %c0_21 = arith.constant 0 : index
    %29 = vector.load %arg3[%c0_19, %c0_20, %c0_21] : memref<1x8x384xf32, #tpu.memory_space<vmem>>, vector<1x8x384xf32>
    %30 = vector.shape_cast %29 : vector<1x8x384xf32> to vector<8x384xf32>
    %31 = vector.shape_cast %28 : vector<8x384xf32> to vector<1x8x384xf32>
    tpu.vector_store %arg3[%c0_19, %c0_20, %c0_21], %31 {strides = array<i32>} : memref<1x8x384xf32, #tpu.memory_space<vmem>>, vector<1x8x384xf32>,
    return
  }
  func.func @transform_0(%arg0: i32) -> (i32, i32, i32) {
    %c0_i32 = arith.constant 0 : i32
    %c0_i32_0 = arith.constant 0 : i32
    %c0_i32_1 = arith.constant 0 : i32
    return %arg0, %c0_i32, %c0_i32_0 : i32, i32, i32
  }
  func.func @transform_1(%arg0: i32) -> (i32, i32) {
    %c0_i32 = arith.constant 0 : i32
    %c0_i32_0 = arith.constant 0 : i32
    %c0_i32_1 = arith.constant 0 : i32
    return %c0_i32, %c0_i32_0 : i32, i32
  }
  func.func @transform_2(%arg0: i32) -> (i32, i32, i32) {
    %c0_i32 = arith.constant 0 : i32
    %c0_i32_0 = arith.constant 0 : i32
    %c0_i32_1 = arith.constant 0 : i32
    return %arg0, %c0_i32, %c0_i32_0 : i32, i32, i32
  }
}

</mosaic_0001>

<llo_original>
// kernel: tpu_custom_call.1
$region0: #{tpu_custom_call.1}
  #allocation0 [shape = 'u32[]', space=smem, size = 0x4, offset = 0x4, fixed_abs, tag = 'smem constant byte address 0x4 - core index']
  #allocation1 [shape = 'u32[144,128]{1,0:T(1,128)}', space=vmem, size = 0x12000, scoped, tag = 'internal scratch']
  #allocation2 [shape = 'f32[80,384]{1,0:T(8,128)}', space=vmem, size = 0x1e000, scoped, tag = 'scratch operand']
  %s0 = inlined_call_operand.hbm [shape: f32[2,8,384], index: 0, kind: input, shape index: {}]
  %s1 = inlined_call_operand.hbm [shape: f32[8,80], index: 1, kind: input, shape index: {}]
  %s2 = inlined_call_operand.hbm [shape: f32[2,8,384], index: 2, kind: output, shape index: {}]
  %s3 = sld [smem:[#allocation0]]
  $region49: #{tpu_custom_call.1} parent=0
    _
  %s5 = ssub.s32 1, %s3
  %s6 = scalar_select 0, %s5, %s3
  $region1: #{tpu_custom_call.1} parent=0
    #allocation3 [shape = 'u8[24576]{0}', space=vmem, size = 0x6000, scoped, tag = 'input window, operand 0']
    #allocation4 [shape = 's32[2]{0}', space=sflag, size = 0x8, scoped, tag = 'scoped memory for tpu_custom_call.1']
    #allocation5 [shape = 's32[2]{0}', space=sflag, size = 0x8, scoped, tag = 'scoped memory for tpu_custom_call.1']
    #allocation6 [shape = 'u8[4096]{0}', space=vmem, size = 0x1000, scoped, tag = 'input window, operand 1, single buffered']
    #allocation7 [shape = 's32[1]{0}', space=sflag, size = 0x4, scoped, tag = 'scoped memory for tpu_custom_call.1']
    #allocation8 [shape = 'u8[24576]{0}', space=vmem, size = 0x6000, scoped, tag = 'output window, operand 0']
    %7 = vsyncpa [#allocation4], 0
    %s8 = scalar_lea.sflag [#allocation4], 1
    %9 = vsyncpa %s8, 0
    %10 = vsyncpa [#allocation7], 0
    %11 = vsyncpa [#allocation5], 0
    %s12 = scalar_lea.sflag [#allocation5], 1
    %13 = vsyncpa %s12, 0
    loop: start=0, step=1, limit=4
    $region2: #{tpu_custom_call.1} parent=1 // loop_pre_header
      _
    $region3: #{tpu_custom_call.1} parent=1 // loop_header
      %s15 = sphi 0, %s19
      %p16 = scmp.ge.s32.totalorder %s15, 4
      %s25 = sphi 0, %s27
      %s28 = sphi 0, %s25
      %s29 = sphi 0, %s28
      %s45 = sphi 0, %s29
      %s49 = sphi 0, %s49
      %s51 = sphi 0, %s49
      %s52 = sphi 0, %s51
      %s66 = sphi 0, %s52
      %s72 = sphi 0, %s74
      %s75 = sphi 0, %s72
      %s76 = sphi 0, %s75
      %s92 = sphi 0, %s76
    $region4: #{tpu_custom_call.1} parent=1 // loop_header_branch
      %18 = sbr.rel (%p16) target = $region8
    $region5: #{tpu_custom_call.1} parent=1 // loop_body
      %s20 = ssub.s32 %s15, 1
      %s21 = ssub.s32 %s15, 2
      %s22 = sadd.s32 %s15, 1
      %s23 = ssub.s32 %s15, %s22
      %p24 = scmp.eq.s32.totalorder %s23, 0
      %s26 = sadd.s32 %s25, 1
      %s27 = scalar_select %p24, %s25, %s26
      %p30 = pneg %p24
      %p31 = scmp.eq.s32.totalorder %s15, 1
      %p32 = por %p30, %p31
      %p33 = scmp.ne.s32.totalorder %s25, %s28
      %p34 = scmp.eq.s32.totalorder %s15, 0
      %p35 = por %p33, %p34
      %p36 = scmp.ne.s32.totalorder %s25, %s28
      %p37 = scmp.eq.s32.totalorder %s20, 1
      %p38 = por %p36, %p37
      %p39 = scmp.ne.s32.totalorder %s28, %s29
      %p40 = scmp.eq.s32.totalorder %s20, 0
      %p41 = por %p39, %p40
      %p42 = scmp.ne.s32.totalorder %s28, %s29
      %p43 = scmp.eq.s32.totalorder %s21, 1
      %p44 = por %p42, %p43
      %p46 = scmp.ne.s32.totalorder %s29, %s45
      %p47 = scmp.eq.s32.totalorder %s21, 0
      %p48 = por %p46, %p47
      %s50 = sadd.s32 %s49, 1
      %p53 = scmp.eq.s32.totalorder %s15, 1
      %p54 = scmp.ne.s32.totalorder %s49, %s51
      %p55 = scmp.eq.s32.totalorder %s15, 0
      %p56 = por %p54, %p55
      %p57 = scmp.ne.s32.totalorder %s49, %s51
      %p58 = scmp.eq.s32.totalorder %s20, 1
      %p59 = por %p57, %p58
      %p60 = scmp.ne.s32.totalorder %s51, %s52
      %p61 = scmp.eq.s32.totalorder %s20, 0
      %p62 = por %p60, %p61
      %p63 = scmp.ne.s32.totalorder %s51, %s52
      %p64 = scmp.eq.s32.totalorder %s21, 1
      %p65 = por %p63, %p64
      %p67 = scmp.ne.s32.totalorder %s52, %s66
      %p68 = scmp.eq.s32.totalorder %s21, 0
      %p69 = por %p67, %p68
      %s70 = ssub.s32 %s15, %s22
      %p71 = scmp.eq.s32.totalorder %s70, 0
      %s73 = sadd.s32 %s72, 1
      %s74 = scalar_select %p71, %s72, %s73
      %p77 = pneg %p71
      %p78 = scmp.eq.s32.totalorder %s15, 1
      %p79 = por %p77, %p78
      %p80 = scmp.ne.s32.totalorder %s72, %s75
      %p81 = scmp.eq.s32.totalorder %s15, 0
      %p82 = por %p80, %p81
      %p83 = scmp.ne.s32.totalorder %s72, %s75
      %p84 = scmp.eq.s32.totalorder %s20, 1
      %p85 = por %p83, %p84
      %p86 = scmp.ne.s32.totalorder %s75, %s76
      %p87 = scmp.eq.s32.totalorder %s20, 0
      %p88 = por %p86, %p87
      %p89 = scmp.ne.s32.totalorder %s75, %s76
      %p90 = scmp.eq.s32.totalorder %s21, 1
      %p91 = por %p89, %p90
      %p93 = scmp.ne.s32.totalorder %s76, %s92
      %p94 = scmp.eq.s32.totalorder %s21, 0
      %p95 = por %p93, %p94
      %p96 = scmp.le.s32.totalorder 1, %s15
      %p97 = scmp.lt.s32.totalorder %s15, 3
      %p98 = pnand %p96, %p97
      %p99 = pneg %p98
      // Predicated region
      $region9: #{tpu_custom_call.1} parent=5 // pred_check
        _
      $region10: #{tpu_custom_call.1} parent=5 // pred_check_branch
        %101 = sbr.rel (%p98) target = $region12
      $region11: #{tpu_custom_call.1} parent=5 // pred_region
        %s102 = ssub.s32 %s15, 1
        // Predicated region
        $region13: #{tpu_custom_call.1} parent=11 // pred_check
          %p103 = pneg %p62
        $region14: #{tpu_custom_call.1} parent=11 // pred_check_branch
          %105 = sbr.rel (%p103) target = $region16
        $region15: #{tpu_custom_call.1} parent=11 // pred_region
          %s107 = ssub.s32 128, 128
          %108 = vsyncadd [#allocation7], %s107
          %s110 = sshll.u32 [#allocation6], 4
          %s111 = int_to_ptr.vmem [resolvable:$true] %s110
          %113 = dma.hbm_to_vmem [thread:$0]  %s1, 128, %s111, [#allocation7]
        $region16: #{tpu_custom_call.1} parent=11 // pred_fallthru
          _
      $region12: #{tpu_custom_call.1} parent=5 // pred_fallthru
        _
      %p114 = scmp.lt.s32.totalorder %s15, 2
      // Predicated region
      $region17: #{tpu_custom_call.1} parent=5 // pred_check
        %p115 = pneg %p114
      $region18: #{tpu_custom_call.1} parent=5 // pred_check_branch
        %117 = sbr.rel (%p115) target = $region20
      $region19: #{tpu_custom_call.1} parent=5 // pred_region
        // Predicated region
        $region21: #{tpu_custom_call.1} parent=19 // pred_check
          %p118 = pneg %p35
        $region22: #{tpu_custom_call.1} parent=19 // pred_check_branch
          %120 = sbr.rel (%p118) target = $region24
        $region23: #{tpu_custom_call.1} parent=19 // pred_region
          %s121 = sand.u32 %s25, 1
          %s122 = scalar_lea.sflag [#allocation4], %s121
          %s123 = sand.u32 %s25, 1
          %s124 = smul.addr %s123, 24
          %s125 = scalar_lea.vmem [#allocation3], %s124
          %s127 = ssub.s32 384, 384
          %128 = vsyncadd %s122, %s127
          %s129 = smul.addr %s15, 3
          %s130 = smul.addr %s129, 128
          %s131 = scalar_lea.hbm %s0, %s130
          %s133 = sshll.u32 %s125, 4
          %s134 = int_to_ptr.vmem [resolvable:$true] %s133
          %136 = dma.hbm_to_vmem [thread:$0]  %s131, 384, %s134, %s122
        $region24: #{tpu_custom_call.1} parent=19 // pred_fallthru
          _
      $region20: #{tpu_custom_call.1} parent=5 // pred_fallthru
        _
      %p137 = scmp.le.s32.totalorder 1, %s15
      %p138 = scmp.lt.s32.totalorder %s15, 3
      %p139 = pnand %p137, %p138
      %p140 = pneg %p139
      // Predicated region
      $region25: #{tpu_custom_call.1} parent=5 // pred_check
        _
      $region26: #{tpu_custom_call.1} parent=5 // pred_check_branch
        %142 = sbr.rel (%p139) target = $region28
      $region27: #{tpu_custom_call.1} parent=5 // pred_region
        %s143 = ssub.s32 %s15, 1
        %s144 = sand.u32 %s28, 1
        %s145 = scalar_lea.sflag [#allocation4], %s144
        %s146 = sand.u32 %s28, 1
        %s147 = smul.addr %s146, 24
        %s148 = scalar_lea.vmem [#allocation3], %s147
        // Predicated region
        $region29: #{tpu_custom_call.1} parent=27 // pred_check
          %p149 = pneg %p41
        $region30: #{tpu_custom_call.1} parent=27 // pred_check_branch
          %151 = sbr.rel (%p149) target = $region32
        $region31: #{tpu_custom_call.1} parent=27 // pred_region
          %152 = dma.done %s145, 384
        $region32: #{tpu_custom_call.1} parent=27 // pred_fallthru
          _
        // Predicated region
        $region33: #{tpu_custom_call.1} parent=27 // pred_check
          %p153 = pneg %p62
        $region34: #{tpu_custom_call.1} parent=27 // pred_check_branch
          %155 = sbr.rel (%p153) target = $region36
        $region35: #{tpu_custom_call.1} parent=27 // pred_region
          %156 = dma.done [#allocation7], 128
        $region36: #{tpu_custom_call.1} parent=27 // pred_fallthru
          _
        %s157 = sand.u32 %s28, 1
        %s158 = scalar_lea.sflag [#allocation4], %s157
        %s159 = sand.u32 %s28, 1
        %s160 = smul.addr %s159, 24
        %s161 = scalar_lea.vmem [#allocation3], %s160
        %p162 = pneg %p41
        %p163 = pneg %p38
        %p164 = pneg %p62
        %p165 = pneg %p59
        %p166 = pneg %p88
        %p167 = pneg %p85
        %s168 = sand.u32 %s75, 1
        %s169 = scalar_lea.sflag [#allocation5], %s168
        %s170 = sand.u32 %s75, 1
        %s171 = smul.addr %s170, 24
        %s172 = scalar_lea.vmem [#allocation8], %s171
        %v173 = vlaneseq
        %v174 = vshrl.u32 %v173, 7
        %vm175 = vcmp.eq.s32.totalorder %v174, 0
        %v176 = vsel %vm175, 1.0, 0.0
        %177 = vst [vmem:[#allocation2 + $0xd8] sm:$0xff] %v176
        %178 = vst [vmem:[#allocation2 + $0xe0] sm:$0xff] %v176
        %179 = vst [vmem:[#allocation2 + $0xe8] sm:$0xff] %v176
        %v180 = vld [vmem:[%s148] sm:$0xff]
        %v181 = vld [vmem:[%s148 + $0x8] sm:$0xff]
        %v182 = vld [vmem:[%s148 + $0x10] sm:$0xff]
        %183 = vrot.lane.b32.xlu0 %v180, 19
        %v184 = vpop.permute.xlu0 %183
        %185 = vrot.lane.b32.xlu0 %v181, 19
        %v186 = vpop.permute.xlu0 %185
        %187 = vrot.lane.b32.xlu0 %v182, 19
        %v188 = vpop.permute.xlu0 %187
        %v189 = vlaneseq
        %v190 = vand.u32 %v189, 127
        %vm191 = vcmp.lt.s32.totalorder %v190, 19
        %v192 = vsel %vm191, %v186, %v188
        %v193 = vsel %vm191, %v184, %v186
        %v194 = vsel %vm191, %v188, %v184
        %195 = vst [vmem:[#allocation2] sm:$0xff] %v194
        %196 = vst [vmem:[#allocation2 + $0x8] sm:$0xff] %v193
        %197 = vst [vmem:[#allocation2 + $0x10] sm:$0xff] %v192
        %198 = vrot.lane.b32.xlu0 %v180, 18
        %v199 = vpop.permute.xlu0 %198
        %200 = vrot.lane.b32.xlu0 %v181, 18
        %v201 = vpop.permute.xlu0 %200
        %202 = vrot.lane.b32.xlu0 %v182, 18
        %v203 = vpop.permute.xlu0 %202
        %vm204 = vcmp.lt.s32.totalorder %v190, 18
        %v205 = vsel %vm204, %v201, %v203
        %v206 = vsel %vm204, %v199, %v201
        %v207 = vsel %vm204, %v203, %v199
        %208 = vst [vmem:[#allocation2 + $0x18] sm:$0xff] %v207
        %209 = vst [vmem:[#allocation2 + $0x20] sm:$0xff] %v206
        %210 = vst [vmem:[#allocation2 + $0x28] sm:$0xff] %v205
        %211 = vrot.lane.b32.xlu0 %v180, 17
        %v212 = vpop.permute.xlu0 %211
        %213 = vrot.lane.b32.xlu0 %v181, 17
        %v214 = vpop.permute.xlu0 %213
        %215 = vrot.lane.b32.xlu0 %v182, 17
        %v216 = vpop.permute.xlu0 %215
        %vm217 = vcmp.lt.s32.totalorder %v190, 17
        %v218 = vsel %vm217, %v214, %v216
        %v219 = vsel %vm217, %v212, %v214
        %v220 = vsel %vm217, %v216, %v212
        %221 = vst [vmem:[#allocation2 + $0x30] sm:$0xff] %v220
        %222 = vst [vmem:[#allocation2 + $0x38] sm:$0xff] %v219
        %223 = vst [vmem:[#allocation2 + $0x40] sm:$0xff] %v218
        %224 = vrot.lane.b32.xlu0 %v180, 1
        %v225 = vpop.permute.xlu0 %224
        %226 = vrot.lane.b32.xlu0 %v181, 1
        %v227 = vpop.permute.xlu0 %226
        %228 = vrot.lane.b32.xlu0 %v182, 1
        %v229 = vpop.permute.xlu0 %228
        %vm230 = vcmp.lt.s32.totalorder %v190, 1
        %v231 = vsel %vm230, %v227, %v229
        %v232 = vsel %vm230, %v225, %v227
        %v233 = vsel %vm230, %v229, %v225
        %234 = vst [vmem:[#allocation2 + $0x48] sm:$0xff] %v233
        %235 = vst [vmem:[#allocation2 + $0x50] sm:$0xff] %v232
        %236 = vst [vmem:[#allocation2 + $0x58] sm:$0xff] %v231
        %237 = vst [vmem:[#allocation2 + $0x60] sm:$0xff] %v180
        %238 = vst [vmem:[#allocation2 + $0x68] sm:$0xff] %v181
        %239 = vst [vmem:[#allocation2 + $0x70] sm:$0xff] %v182
        %240 = vrot.lane.b32.xlu0 %v180, 127
        %v241 = vpop.permute.xlu0 %240
        %242 = vrot.lane.b32.xlu0 %v181, 127
        %v243 = vpop.permute.xlu0 %242
        %244 = vrot.lane.b32.xlu0 %v182, 127
        %v245 = vpop.permute.xlu0 %244
        %vm246 = vcmp.lt.s32.totalorder %v190, 127
        %v247 = vsel %vm246, %v243, %v245
        %v248 = vsel %vm246, %v241, %v243
        %v249 = vsel %vm246, %v245, %v241
        %250 = vst [vmem:[#allocation2 + $0x78] sm:$0xff] %v248
        %251 = vst [vmem:[#allocation2 + $0x80] sm:$0xff] %v247
        %252 = vst [vmem:[#allocation2 + $0x88] sm:$0xff] %v249
        %253 = vrot.lane.b32.xlu0 %v180, 111
        %v254 = vpop.permute.xlu0 %253
        %255 = vrot.lane.b32.xlu0 %v181, 111
        %v256 = vpop.permute.xlu0 %255
        %257 = vrot.lane.b32.xlu0 %v182, 111
        %v258 = vpop.permute.xlu0 %257
        %vm259 = vcmp.lt.s32.totalorder %v190, 111
        %v260 = vsel %vm259, %v256, %v258
        %v261 = vsel %vm259, %v254, %v256
        %v262 = vsel %vm259, %v258, %v254
        %263 = vst [vmem:[#allocation2 + $0x90] sm:$0xff] %v261
        %264 = vst [vmem:[#allocation2 + $0x98] sm:$0xff] %v260
        %265 = vst [vmem:[#allocation2 + $0xa0] sm:$0xff] %v262
        %266 = vrot.lane.b32.xlu0 %v180, 110
        %v267 = vpop.permute.xlu0 %266
        %268 = vrot.lane.b32.xlu0 %v181, 110
        %v269 = vpop.permute.xlu0 %268
        %270 = vrot.lane.b32.xlu0 %v182, 110
        %v271 = vpop.permute.xlu0 %270
        %vm272 = vcmp.lt.s32.totalorder %v190, 110
        %v273 = vsel %vm272, %v269, %v271
        %v274 = vsel %vm272, %v267, %v269
        %v275 = vsel %vm272, %v271, %v267
        %276 = vst [vmem:[#allocation2 + $0xa8] sm:$0xff] %v274
        %277 = vst [vmem:[#allocation2 + $0xb0] sm:$0xff] %v273
        %278 = vst [vmem:[#allocation2 + $0xb8] sm:$0xff] %v275
        %279 = vrot.lane.b32.xlu0 %v180, 109
        %v280 = vpop.permute.xlu0 %279
        %281 = vrot.lane.b32.xlu0 %v181, 109
        %v282 = vpop.permute.xlu0 %281
        %283 = vrot.lane.b32.xlu0 %v182, 109
        %v284 = vpop.permute.xlu0 %283
        %vm285 = vcmp.lt.s32.totalorder %v190, 109
        %v286 = vsel %vm285, %v282, %v284
        %v287 = vsel %vm285, %v280, %v282
        %v288 = vsel %vm285, %v284, %v280
        %289 = vst [vmem:[#allocation2 + $0xc0] sm:$0xff] %v287
        %290 = vst [vmem:[#allocation2 + $0xc8] sm:$0xff] %v286
        %291 = vst [vmem:[#allocation2 + $0xd0] sm:$0xff] %v288
        %v292 = vld [vmem:[#allocation6] sm:$0xff]
        %v293 = vld [vmem:[#allocation2] sm:$0xff]
        %v294 = vld [vmem:[#allocation2 + $0x8] sm:$0xff]
        %v295 = vld [vmem:[#allocation2 + $0x10] sm:$0xff]
        %v296 = vld [vmem:[#allocation2 + $0x18] sm:$0xff]
        %v297 = vld [vmem:[#allocation2 + $0x20] sm:$0xff]
        %v298 = vld [vmem:[#allocation2 + $0x28] sm:$0xff]
        %v299 = vld [vmem:[#allocation2 + $0x30] sm:$0xff]
        %v300 = vld [vmem:[#allocation2 + $0x38] sm:$0xff]
        %v301 = vld [vmem:[#allocation2 + $0x40] sm:$0xff]
        %v302 = vld [vmem:[#allocation2 + $0x48] sm:$0xff]
        %v303 = vld [vmem:[#allocation2 + $0x50] sm:$0xff]
        %v304 = vld [vmem:[#allocation2 + $0x58] sm:$0xff]
        %v305 = vld [vmem:[#allocation2 + $0x60] sm:$0xff]
        %v306 = vld [vmem:[#allocation2 + $0x68] sm:$0xff]
        %v307 = vld [vmem:[#allocation2 + $0x70] sm:$0xff]
        %v308 = vld [vmem:[#allocation2 + $0x78] sm:$0xff]
        %v309 = vld [vmem:[#allocation2 + $0x80] sm:$0xff]
        %v310 = vld [vmem:[#allocation2 + $0x88] sm:$0xff]
        %v311 = vld [vmem:[#allocation2 + $0x90] sm:$0xff]
        %v312 = vld [vmem:[#allocation2 + $0x98] sm:$0xff]
        %v313 = vld [vmem:[#allocation2 + $0xa0] sm:$0xff]
        %v314 = vld [vmem:[#allocation2 + $0xa8] sm:$0xff]
        %v315 = vld [vmem:[#allocation2 + $0xb0] sm:$0xff]
        %v316 = vld [vmem:[#allocation2 + $0xb8] sm:$0xff]
        %v317 = vld [vmem:[#allocation2 + $0xc0] sm:$0xff]
        %v318 = vld [vmem:[#allocation2 + $0xc8] sm:$0xff]
        %v319 = vld [vmem:[#allocation2 + $0xd0] sm:$0xff]
        %v320 = vld [vmem:[#allocation2 + $0xd8] sm:$0xff]
        %v321 = vld [vmem:[#allocation2 + $0xe0] sm:$0xff]
        %v322 = vld [vmem:[#allocation2 + $0xe8] sm:$0xff]
        %vm323 = vcmask 654336
        %v325 = vsel %vm323, %v292, 0
        %327 = vmatprep.subr.mxu0 %v294
        %328 = vmatpush1.msra.mxu0 %v293
        %329 = vmatprep.subr.mxu0 %v297
        %330 = vmatpush1.msra.mxu0 %v296
        %331 = vmatprep.subr.mxu0 %v300
        %332 = vmatpush1.msra.mxu0 %v299
        %333 = vmatprep.subr.mxu0 %v303
        %334 = vmatpush1.msra.mxu0 %v302
        %335 = vmatprep.subr.mxu0 %v306
        %336 = vmatpush1.msra.mxu0 %v305
        %337 = vmatprep.subr.mxu0 %v309
        %338 = vmatpush1.msra.mxu0 %v308
        %339 = vmatprep.subr.mxu0 %v312
        %340 = vmatpush1.msra.mxu0 %v311
        %341 = vmatprep.subr.mxu0 %v315
        %342 = vmatpush1.msra.mxu0 %v314
        %343 = vmatprep.subr.mxu0 %v318
        %344 = vmatpush1.msra.mxu0 %v317
        %345 = vmatprep.subr.mxu0 %v321
        %346 = vmatpush1.msra.mxu0 %v320
        %347 = vmatprep.subr.mxu0 0.0
        %348 = vmatpush1.msra.mxu0 0.0
        %349 = vmatprep.subr.mxu0 0.0
        %350 = vmatpush1.msra.mxu0 0.0
        %351 = vmatprep.subr.mxu0 0.0
        %352 = vmatpush1.msra.mxu0 0.0
        %353 = vmatprep.subr.mxu0 0.0
        %354 = vmatpush1.msra.mxu0 0.0
        %355 = vmatprep.subr.mxu0 0.0
        %356 = vmatpush1.msra.mxu0 0.0
        %357 = vmatprep.subr.mxu0 0.0
        %358 = vmatpush1.msra.mxu0 0.0
        %359 = vmatprep.subr.mxu0 0.0
        %360 = vmatpush1.msra.mxu0 0.0
        %361 = vmatprep.subr.mxu0 0.0
        %362 = vmatpush1.msra.mxu0 0.0
        %363 = vmatprep.subr.mxu0 0.0
        %364 = vmatpush1.msra.mxu0 0.0
        %365 = vmatprep.subr.mxu0 0.0
        %366 = vmatpush1.msra.mxu0 0.0
        %367 = vmatprep.subr.mxu0 0.0
        %368 = vmatpush1.msra.mxu0 0.0
        %369 = vmatprep.subr.mxu0 0.0
        %370 = vmatpush1.msra.mxu0 0.0
        %371 = vmatprep.subr.mxu0 0.0
        %372 = vmatpush1.msra.mxu0 0.0
        %373 = vmatprep.subr.mxu0 0.0
        %374 = vmatpush1.msra.mxu0 0.0
        %375 = vmatprep.subr.mxu0 0.0
        %376 = vmatpush1.msra.mxu0 0.0
        %377 = vmatprep.subr.mxu0 0.0
        %378 = vmatpush1.msra.mxu0 0.0
        %379 = vmatprep.subr.mxu0 0.0
        %380 = vmatpush1.msra.mxu0 0.0
        %381 = vmatprep.subr.mxu0 0.0
        %382 = vmatpush1.msra.mxu0 0.0
        %383 = vmatprep.subr.mxu0 0.0
        %384 = vmatpush1.msra.mxu0 0.0
        %385 = vmatprep.subr.mxu0 0.0
        %386 = vmatpush1.msra.mxu0 0.0
        %387 = vmatprep.subr.mxu0 0.0
        %388 = vmatpush1.msra.mxu0 0.0
        %389 = vmatprep.subr.mxu0 0.0
        %390 = vmatpush1.msra.mxu0 0.0
        %391 = vmatprep.mubr.f32.mxu0 0.0
        %392 = vmatmul.mubr.f32.gmra.mrb[0].mxu0 %v325
        %v393 = vpop.f32.mrb[0].mxu0
        %v394 = vadd.f32 0.0, %v393
        %v395 = vpop.f32.mrb[0].mxu0
        %v396 = vadd.f32 0.0, %v395
        %397 = vdwg.mxu0
        %398 = vmatprep.subr.mxu0 0.0
        %399 = vmatpush1.msra.mxu0 %v295
        %400 = vmatprep.subr.mxu0 0.0
        %401 = vmatpush1.msra.mxu0 %v298
        %402 = vmatprep.subr.mxu0 0.0
        %403 = vmatpush1.msra.mxu0 %v301
        %404 = vmatprep.subr.mxu0 0.0
        %405 = vmatpush1.msra.mxu0 %v304
        %406 = vmatprep.subr.mxu0 0.0
        %407 = vmatpush1.msra.mxu0 %v307
        %408 = vmatprep.subr.mxu0 0.0
        %409 = vmatpush1.msra.mxu0 %v310
        %410 = vmatprep.subr.mxu0 0.0
        %411 = vmatpush1.msra.mxu0 %v313
        %412 = vmatprep.subr.mxu0 0.0
        %413 = vmatpush1.msra.mxu0 %v316
        %414 = vmatprep.subr.mxu0 0.0
        %415 = vmatpush1.msra.mxu0 %v319
        %416 = vmatprep.subr.mxu0 0.0
        %417 = vmatpush1.msra.mxu0 %v322
        %418 = vmatprep.subr.mxu0 0.0
        %419 = vmatpush1.msra.mxu0 0.0
        %420 = vmatprep.subr.mxu0 0.0
        %421 = vmatpush1.msra.mxu0 0.0
        %422 = vmatprep.subr.mxu0 0.0
        %423 = vmatpush1.msra.mxu0 0.0
        %424 = vmatprep.subr.mxu0 0.0
        %425 = vmatpush1.msra.mxu0 0.0
        %426 = vmatprep.subr.mxu0 0.0
        %427 = vmatpush1.msra.mxu0 0.0
        %428 = vmatprep.subr.mxu0 0.0
        %429 = vmatpush1.msra.mxu0 0.0
        %430 = vmatprep.subr.mxu0 0.0
        %431 = vmatpush1.msra.mxu0 0.0
        %432 = vmatprep.subr.mxu0 0.0
        %433 = vmatpush1.msra.mxu0 0.0
        %434 = vmatprep.subr.mxu0 0.0
        %435 = vmatpush1.msra.mxu0 0.0
        %436 = vmatprep.subr.mxu0 0.0
        %437 = vmatpush1.msra.mxu0 0.0
        %438 = vmatprep.subr.mxu0 0.0
        %439 = vmatpush1.msra.mxu0 0.0
        %440 = vmatprep.subr.mxu0 0.0
        %441 = vmatpush1.msra.mxu0 0.0
        %442 = vmatprep.subr.mxu0 0.0
        %443 = vmatpush1.msra.mxu0 0.0
        %444 = vmatprep.subr.mxu0 0.0
        %445 = vmatpush1.msra.mxu0 0.0
        %446 = vmatprep.subr.mxu0 0.0
        %447 = vmatpush1.msra.mxu0 0.0
        %448 = vmatprep.subr.mxu0 0.0
        %449 = vmatpush1.msra.mxu0 0.0
        %450 = vmatprep.subr.mxu0 0.0
        %451 = vmatpush1.msra.mxu0 0.0
        %452 = vmatprep.subr.mxu0 0.0
        %453 = vmatpush1.msra.mxu0 0.0
        %454 = vmatprep.subr.mxu0 0.0
        %455 = vmatpush1.msra.mxu0 0.0
        %456 = vmatprep.subr.mxu0 0.0
        %457 = vmatpush1.msra.mxu0 0.0
        %458 = vmatprep.subr.mxu0 0.0
        %459 = vmatpush1.msra.mxu0 0.0
        %460 = vmatprep.subr.mxu0 0.0
        %461 = vmatpush1.msra.mxu0 0.0
        %462 = vmatprep.mubr.f32.mxu0 0.0
        %463 = vmatmul.mubr.f32.gmra.mrb[0].mxu0 %v325
        %v464 = vpop.f32.mrb[0].mxu0
        %v465 = vadd.f32 0.0, %v464
        %v466 = vpop.f32.mrb[0].mxu0
        %467 = vdwg.mxu0
        %468 = vst [vmem:[%s172] sm:$0xff] %v394
        %469 = vst [vmem:[%s172 + $0x8] sm:$0xff] %v396
        %470 = vst [vmem:[%s172 + $0x10] sm:$0xff] %v465
        %s471 = sand.u32 %s75, 1
        %s472 = scalar_lea.sflag [#allocation5], %s471
        %s473 = sand.u32 %s75, 1
        %s474 = smul.addr %s473, 24
        %s475 = scalar_lea.vmem [#allocation8], %s474
        // Predicated region
        $region37: #{tpu_custom_call.1} parent=27 // pred_check
          %p476 = pneg %p85
        $region38: #{tpu_custom_call.1} parent=27 // pred_check_branch
          %478 = sbr.rel (%p476) target = $region40
        $region39: #{tpu_custom_call.1} parent=27 // pred_region
          %s480 = ssub.s32 384, 384
          %481 = vsyncadd %s472, %s480
          %s482 = smul.addr %s20, 3
          %s483 = smul.addr %s482, 128
          %s484 = scalar_lea.hbm %s2, %s483
          %s486 = sshll.u32 %s475, 4
          %s487 = int_to_ptr.vmem [resolvable:$true] %s486
          %489 = dma.vmem_to_hbm [thread:$0]  %s487, 384, %s484, %s472
        $region40: #{tpu_custom_call.1} parent=27 // pred_fallthru
          _
      $region28: #{tpu_custom_call.1} parent=5 // pred_fallthru
        _
      %p490 = scmp.le.s32.totalorder 2, %s15
      // Predicated region
      $region41: #{tpu_custom_call.1} parent=5 // pred_check
        %p491 = pneg %p490
      $region42: #{tpu_custom_call.1} parent=5 // pred_check_branch
        %493 = sbr.rel (%p491) target = $region44
      $region43: #{tpu_custom_call.1} parent=5 // pred_region
        %s494 = ssub.s32 %s15, 2
        // Predicated region
        $region45: #{tpu_custom_call.1} parent=43 // pred_check
          %p495 = pneg %p91
        $region46: #{tpu_custom_call.1} parent=43 // pred_check_branch
          %497 = sbr.rel (%p495) target = $region48
        $region47: #{tpu_custom_call.1} parent=43 // pred_region
          %s498 = sand.u32 %s76, 1
          %s499 = scalar_lea.sflag [#allocation5], %s498
          %s500 = sand.u32 %s76, 1
          %s501 = smul.addr %s500, 24
          %s502 = scalar_lea.vmem [#allocation8], %s501
          %503 = dma.done %s499, 384
        $region48: #{tpu_custom_call.1} parent=43 // pred_fallthru
          _
      $region44: #{tpu_custom_call.1} parent=5 // pred_fallthru
        _
    $region6: #{tpu_custom_call.1} parent=1 // loop_footer
      %s19 = sadd.s32 1, %s15
    $region7: #{tpu_custom_call.1} parent=1 // loop_footer_branch
      %14 = sbr.rel target = $region3
    $region8: #{tpu_custom_call.1} parent=1 // loop_exit
      _
    %504 = vsyncpa [#allocation4], 1
    %s505 = scalar_lea.sflag [#allocation4], 1
    %506 = vsyncpa %s505, 1
    %507 = vsyncpa [#allocation7], 1
    %508 = vsyncpa [#allocation5], 1
    %s509 = scalar_lea.sflag [#allocation5], 1
    %510 = vsyncpa %s509, 1

</llo_original>
